<compile_context>
chip_gen: v7x
topology: tpu7x:2x2x1
jax: 0.10.0
libtpu: 0.0.40
codegen_flags: <defaults>
</compile_context>

<pallas_src>
import jax
import jax.numpy as jnp
from jax.experimental import pallas as pl
from jax.experimental.pallas import tpu as pltpu


def _binary_kernel(x_ref, o_ref):
    # Elementwise threshold on the whole VMEM tile (VPU compare + cast).
    x = x_ref[...]
    if jnp.issubdtype(x.dtype, jnp.floating):
        cmp = x >= jnp.asarray(0.5, dtype=x.dtype)
    else:
        # Integer / bool inputs: x >= 0.5 over ints is exactly x >= 1.
        # Native compare avoids the int->f32 upcast (4x vreg expansion for i8).
        cmp = x >= jnp.asarray(1, dtype=x.dtype)
    o_ref[...] = cmp.astype(o_ref.dtype)


_LANES = (1024, 512, 256, 128)


def _choose_lane(n: int):
    """Widest lane-dense last dim (multiple of 128) that divides n exactly."""
    for lane in _LANES:
        if n % lane == 0:
            return lane
    return None


def _run_tiled(x2d: jax.Array) -> jax.Array:
    """Run the threshold kernel on a (rows, lane) lane-dense 2D view."""
    rows, lane = x2d.shape
    dtype = x2d.dtype
    itemsize = jnp.dtype(dtype).itemsize
    n = rows * lane
    total_bytes = n * itemsize

    # ~4 MiB blocks (sweet spot: ~90%+ of HBM roofline on v7x, within the
    # "don't exceed ~4 MiB" guidance for v6e). Sublane count a multiple of 32
    # for dtype-packing insurance (bf16/int8).
    target_block_bytes = 4 << 20
    target_rows = max(32, (target_block_bytes // (lane * itemsize)) // 32 * 32)

    if target_rows >= rows:
        if total_bytes > (2 << 20):
            # Split into >=2 (roughly even) steps so the "parallel" grid axis
            # can be sharded across v7x's two TensorCores. Neutral on v5e/v6e.
            tile_rows = ((pl.cdiv(rows, 2) + 31) // 32) * 32
            tile_rows = min(tile_rows, rows)
        else:
            tile_rows = rows  # single full-array block (equals full dims)
    else:
        tile_rows = target_rows

    grid = (pl.cdiv(rows, tile_rows),)

    return pl.pallas_call(
        _binary_kernel,
        out_shape=jax.ShapeDtypeStruct((rows, lane), dtype),
        grid_spec=pltpu.PrefetchScalarGridSpec(
            num_scalar_prefetch=0,
            grid=grid,
            in_specs=[pl.BlockSpec((tile_rows, lane), lambda i: (i, 0))],
            out_specs=pl.BlockSpec((tile_rows, lane), lambda i: (i, 0)),
        ),
        compiler_params=pltpu.CompilerParams(
            dimension_semantics=("parallel",),
            # 2 arrays x 2 pipeline buffers x 4 MiB = 16 MiB; raise v5e's 16 MiB
            # scoped default so the budget is safe everywhere, with headroom
            # inside v7x's 64 MiB physical VMEM.
            vmem_limit_bytes=32 << 20,
        ),
        cost_estimate=pl.CostEstimate(
            flops=n, transcendentals=0, bytes_accessed=2 * total_bytes
        ),
    )(x2d)


def binary(x: jax.Array) -> jax.Array:
    """(x >= 0.5) cast back to x.dtype, same shape as x."""
    orig_shape = x.shape
    dtype = x.dtype
    n = x.size
    if n == 0:
        return x

    lane = _choose_lane(n)
    x_flat = jnp.ravel(x)

    if lane is not None:
        out2d = _run_tiled(x_flat.reshape(n // lane, lane))
        return out2d.reshape(orig_shape)

    # Rare misaligned path (n % 128 != 0): kernel on the 128-aligned prefix,
    # <128-element tail in plain JAX. Avoids full-array pad + post-slice copies.
    lane = 128
    aligned = (n // lane) * lane
    parts = []
    if aligned > 0:
        head = _run_tiled(x_flat[:aligned].reshape(aligned // lane, lane))
        parts.append(head.reshape(-1))
    tail = x_flat[aligned:]
    if jnp.issubdtype(dtype, jnp.floating):
        tail_out = (tail >= jnp.asarray(0.5, dtype=dtype)).astype(dtype)
    else:
        tail_out = (tail >= jnp.asarray(1, dtype=dtype)).astype(dtype)
    parts.append(tail_out)
    return jnp.concatenate(parts).reshape(orig_shape)


if __name__ == "__main__":
    key = jax.random.PRNGKey(0)
    # Small NCHW-shaped input consistent with a conv-style module.
    x = jax.random.uniform(key, (2, 4, 16, 16), dtype=jnp.float32)

    out = jax.block_until_ready(binary(x))

    # Reference check against plain JAX semantics of (x >= 0.5).type_as(x).
    ref = (x >= 0.5).astype(x.dtype)
    assert out.shape == x.shape and out.dtype == x.dtype
    assert bool(jnp.all(out == ref))

    print("KERNEL_OK")
</pallas_src>

<mosaic_0001>
module attributes {stable_mosaic.version = 11 : i64} {
  func.func @_binary_kernel(%arg0: i32, %arg1: memref<2x1024xf32, #tpu.memory_space<vmem>>, %arg2: memref<2x1024xf32, #tpu.memory_space<vmem>>) attributes {dimension_semantics = [#tpu.dimension_semantics<parallel>], iteration_bounds = array<i64: 1>, scalar_prefetch = 0 : i64, scratch_operands = 0 : i64, tpu.core_type = #tpu.core_type<tc>, window_params = [{transform_indices = @transform_0, window_bounds = array<i64: 2, 1024>}, {transform_indices = @transform_1, window_bounds = array<i64: 2, 1024>}]} {
    %c0 = arith.constant 0 : index
    %c0_0 = arith.constant 0 : index
    %0 = vector.load %arg1[%c0, %c0_0] : memref<2x1024xf32, #tpu.memory_space<vmem>>, vector<2x1024xf32>
    %cst = arith.constant 5.000000e-01 : f32
    %1 = vector.broadcast %cst : f32 to vector<2x1024xf32>
    %2 = arith.cmpf oge, %0, %1 : vector<2x1024xf32>
    %3 = arith.extui %2 : vector<2x1024xi1> to vector<2x1024xi32>
    %4 = arith.sitofp %3 : vector<2x1024xi32> to vector<2x1024xf32>
    %c0_1 = arith.constant 0 : index
    %c0_2 = arith.constant 0 : index
    %5 = vector.load %arg2[%c0_1, %c0_2] : memref<2x1024xf32, #tpu.memory_space<vmem>>, vector<2x1024xf32>
    tpu.vector_store %arg2[%c0_1, %c0_2], %4 {strides = array<i32>} : memref<2x1024xf32, #tpu.memory_space<vmem>>, vector<2x1024xf32>,
    return
  }
  func.func @transform_0(%arg0: i32) -> (i32, i32) {
    %c0_i32 = arith.constant 0 : i32
    %c0_i32_0 = arith.constant 0 : i32
    return %arg0, %c0_i32 : i32, i32
  }
  func.func @transform_1(%arg0: i32) -> (i32, i32) {
    %c0_i32 = arith.constant 0 : i32
    %c0_i32_0 = arith.constant 0 : i32
    return %arg0, %c0_i32 : i32, i32
  }
}

</mosaic_0001>

<llo_original>
// kernel: tpu_custom_call.1
$region0: #{tpu_custom_call.1}
  #allocation0 [shape = 'u32[]', space=smem, size = 0x4, offset = 0x4, fixed_abs, tag = 'smem constant byte address 0x4 - core index']
  #allocation1 [shape = 'u32[144,128]{1,0:T(1,128)}', space=vmem, size = 0x12000, scoped, tag = 'internal scratch']
  %s0 = inlined_call_operand.hbm [shape: f32[2,1024], index: 0, kind: input, shape index: {}]
  %s1 = inlined_call_operand.hbm [shape: f32[2,1024], index: 1, kind: output, shape index: {}]
  %s2 = sld [smem:[#allocation0]]
  $region18: #{tpu_custom_call.1} parent=0
    _
  %s4 = ssub.s32 1, %s2
  %s5 = scalar_select 0, %s4, %s2
  $region1: #{tpu_custom_call.1} parent=0
    #allocation2 [shape = 'u8[8192]{0}', space=vmem, size = 0x2000, scoped, tag = 'input window, operand 0, single buffered']
    #allocation3 [shape = 's32[1]{0}', space=sflag, size = 0x4, scoped, tag = 'scoped memory for tpu_custom_call.1']
    #allocation4 [shape = 's32[1]{0}', space=sflag, size = 0x4, scoped, tag = 'scoped memory for tpu_custom_call.1']
    #allocation5 [shape = 'u8[8192]{0}', space=vmem, size = 0x2000, scoped, tag = 'output window, operand 0, single buffered']
    %6 = vsyncpa [#allocation3], 0
    %7 = vsyncpa [#allocation4], 0
    // Predicated region
    $region2: #{tpu_custom_call.1} parent=1 // pred_check
      _
    $region3: #{tpu_custom_call.1} parent=1 // pred_check_branch
      %9 = sbr.rel (0) target = $region5
    $region4: #{tpu_custom_call.1} parent=1 // pred_region
      %s11 = ssub.s32 256, 256
      %12 = vsyncadd [#allocation3], %s11
      %s14 = sshll.u32 [#allocation2], 4
      %s15 = int_to_ptr.vmem [resolvable:$true] %s14
      %17 = dma.hbm_to_vmem [thread:$0]  %s0, 256, %s15, [#allocation3]
    $region5: #{tpu_custom_call.1} parent=1 // pred_fallthru
      _
    // Predicated region
    $region6: #{tpu_custom_call.1} parent=1 // pred_check
      _
    $region7: #{tpu_custom_call.1} parent=1 // pred_check_branch
      %19 = sbr.rel (0) target = $region9
    $region8: #{tpu_custom_call.1} parent=1 // pred_region
      %20 = dma.done [#allocation3], 256
    $region9: #{tpu_custom_call.1} parent=1 // pred_fallthru
      _
    %v21 = vld [vmem:[#allocation2] sm:$0xff]
    %v22 = vld [vmem:[#allocation2 + $0x8] sm:$0xff]
    %vm23 = vcmp.ge.f32.partialorder %v21, 0.5
    %vm24 = vcmp.ge.f32.partialorder %v22, 0.5
    %v25 = vsel %vm23, 1, 0
    %v26 = vsel %vm24, 1, 0
    %v27 = vcvt.s32.f32 %v25
    %v28 = vcvt.s32.f32 %v26
    %29 = vst [vmem:[#allocation5] sm:$0xff] %v27
    %30 = vst [vmem:[#allocation5 + $0x8] sm:$0xff] %v28
    // Predicated region
    $region10: #{tpu_custom_call.1} parent=1 // pred_check
      _
    $region11: #{tpu_custom_call.1} parent=1 // pred_check_branch
      %32 = sbr.rel (0) target = $region13
    $region12: #{tpu_custom_call.1} parent=1 // pred_region
      %s34 = ssub.s32 256, 256
      %35 = vsyncadd [#allocation4], %s34
      %s37 = sshll.u32 [#allocation5], 4
      %s38 = int_to_ptr.vmem [resolvable:$true] %s37
      %40 = dma.vmem_to_hbm [thread:$0]  %s38, 256, %s1, [#allocation4]
    $region13: #{tpu_custom_call.1} parent=1 // pred_fallthru
      _
    // Predicated region
    $region14: #{tpu_custom_call.1} parent=1 // pred_check
      _
    $region15: #{tpu_custom_call.1} parent=1 // pred_check_branch
      %42 = sbr.rel (0) target = $region17
    $region16: #{tpu_custom_call.1} parent=1 // pred_region
      %43 = dma.done [#allocation4], 256
    $region17: #{tpu_custom_call.1} parent=1 // pred_fallthru
      _
    %44 = vsyncpa [#allocation3], 1
    %45 = vsyncpa [#allocation4], 1

</llo_original>
